<compile_context>
chip_gen: v6e
topology: v6e:2x2x1
jax: 0.10.0
libtpu: 0.0.40
codegen_flags: <defaults>
</compile_context>

<pallas_src>
import math

import jax
import jax.numpy as jnp
from jax.experimental import pallas as pl
from jax.experimental.pallas import tpu as pltpu

EPS = 1e-5

_LANE = 128
_SUBLANE = 8
_DEFAULT_VMEM_BLOCK_BUDGET = 16 * 1024 * 1024   # live double-buffered block bytes
_VMEM_LIMIT_BYTES = 32 * 1024 * 1024            # scoped VMEM requested (safe on v5e/v6e/v7x)
_DEFAULT_MAX_ROWS_PER_BLOCK = 1024


def _cdiv(a, b):
    return -(-a // b)


def _round_up(v, m):
    return _cdiv(v, m) * m


def _affine_kernel(x_ref, scale_ref, shift_ref, o_ref):
    """o = x * scale + shift, with scale/shift rows broadcast over x rows."""
    x = x_ref[...]
    s = scale_ref[...]
    b = shift_ref[...]
    reps = x.shape[0] // s.shape[0]
    if s.shape[0] > 1 and reps > 1:
        # Folded small-batch layout: stats rows repeat with period s.shape[0].
        s = jnp.tile(s, (reps, 1))
        b = jnp.tile(b, (reps, 1))
    o_ref[...] = x * s + b


def _block_bytes(rows, lanes, stats_rows, itemsize):
    rp = _round_up(rows, _SUBLANE)
    sp = _round_up(stats_rows, _SUBLANE)
    lp = _round_up(lanes, _LANE)
    # 2 pipeline buffers * (x + out + scale + shift) + in-kernel broadcast headroom.
    return itemsize * lp * (2 * (2 * rp + 2 * sp) + 2 * rp)


def _pick_lane_tile(cols_pad, row_block, stats_rows, itemsize, budget):
    rp = _round_up(row_block, _SUBLANE)
    sp = _round_up(stats_rows, _SUBLANE)
    bytes_per_lane = itemsize * (2 * (2 * rp + 2 * sp) + 2 * rp)
    tl_max = max(_LANE, (budget // bytes_per_lane) // _LANE * _LANE)
    if cols_pad <= tl_max:
        return cols_pad
    # Largest multiple of 128 that divides cols_pad and fits the budget.
    t = tl_max
    while t >= _LANE:
        if cols_pad % t == 0:
            return t
        t -= _LANE
    return _LANE


def input_normalizer_encode(x, mean, std, *,
                            vmem_block_budget=_DEFAULT_VMEM_BLOCK_BUDGET,
                            max_rows_per_block=_DEFAULT_MAX_ROWS_PER_BLOCK):
    """Pallas TPU version of UnitGaussianNormalizer.encode(x).

    x: (N, *feat); mean/std: (*feat).  Returns array with x.shape / x.dtype.
    """
    N = x.shape[0]
    feat_shape = x.shape[1:]
    D = int(math.prod(feat_shape))
    dtype = x.dtype
    itemsize = jnp.dtype(dtype).itemsize

    # ---- wrapper-side precompute on the tiny (D-sized) constant statistics --
    inv = 1.0 / (std.astype(jnp.float32).reshape(D) + EPS)
    scale = inv.astype(dtype)
    shift = (-mean.astype(jnp.float32).reshape(D) * inv).astype(dtype)

    x2 = x.reshape(N, D)

    # ---- path 1: whole problem in a single block (tiny inputs) --------------
    if _block_bytes(N, D, 1, itemsize) <= vmem_block_budget:
        out2 = pl.pallas_call(
            _affine_kernel,
            out_shape=jax.ShapeDtypeStruct((N, D), dtype),
            grid=(1,),
            in_specs=[
                pl.BlockSpec((N, D), lambda j: (0, 0)),
                pl.BlockSpec((1, D), lambda j: (0, 0)),
                pl.BlockSpec((1, D), lambda j: (0, 0)),
            ],
            out_specs=pl.BlockSpec((N, D), lambda j: (0, 0)),
            compiler_params=pltpu.CompilerParams(
                dimension_semantics=("arbitrary",),
                vmem_limit_bytes=_VMEM_LIMIT_BYTES,
            ),
        )(x2, scale.reshape(1, D), shift.reshape(1, D))
        return out2.reshape(x.shape)

    # ---- path 2: tiled over (rows, feature) ---------------------------------
    rows, cols, stats_rows = N, D, 1

    # Small-batch fold: make blocks 8-sublane dense by moving a factor F of the
    # feature dim into the row dim: x -> (N*F, D//F), stats -> (F, D//F).
    if N < _SUBLANE:
        best = None
        f = 1
        while N * f <= 64:
            if D % f == 0 and (D // f) % _LANE == 0:
                if (N * f) % _SUBLANE == 0:
                    best = f
                    break
                if best is None and N * f >= _SUBLANE:
                    best = f
            f += 1
        if best is not None and best > 1:
            rows, cols, stats_rows = N * best, D // best, best

    cols_pad = _round_up(cols, _LANE)

    # Row blocking (only for the unfolded layout; folded rows are <= 64).
    if rows > max_rows_per_block and stats_rows == 1:
        n_row_blocks = _cdiv(rows, max_rows_per_block)
        row_block = _round_up(_cdiv(rows, n_row_blocks), _SUBLANE)
        rows_pad = row_block * n_row_blocks
    else:
        row_block = rows
        rows_pad = rows
        n_row_blocks = 1

    x3 = x2.reshape(rows, cols)
    sc3 = scale.reshape(stats_rows, cols)
    sh3 = shift.reshape(stats_rows, cols)
    if cols_pad != cols:
        x3 = jnp.pad(x3, ((0, 0), (0, cols_pad - cols)))
        sc3 = jnp.pad(sc3, ((0, 0), (0, cols_pad - cols)))
        sh3 = jnp.pad(sh3, ((0, 0), (0, cols_pad - cols)))
    if rows_pad != rows:
        x3 = jnp.pad(x3, ((0, rows_pad - rows), (0, 0)))

    tile = _pick_lane_tile(cols_pad, row_block, stats_rows, itemsize,
                           vmem_block_budget)
    n_col_blocks = cols_pad // tile

    # Feature blocks outermost, row blocks innermost: the scale/shift block
    # index ignores the row axis, so stats are DMA'd once per feature block.
    out3 = pl.pallas_call(
        _affine_kernel,
        out_shape=jax.ShapeDtypeStruct((rows_pad, cols_pad), dtype),
        grid=(n_col_blocks, n_row_blocks),
        in_specs=[
            pl.BlockSpec((row_block, tile), lambda dj, ri: (ri, dj)),
            pl.BlockSpec((stats_rows, tile), lambda dj, ri: (0, dj)),
            pl.BlockSpec((stats_rows, tile), lambda dj, ri: (0, dj)),
        ],
        out_specs=pl.BlockSpec((row_block, tile), lambda dj, ri: (ri, dj)),
        compiler_params=pltpu.CompilerParams(
            dimension_semantics=("parallel", "parallel"),
            vmem_limit_bytes=_VMEM_LIMIT_BYTES,
        ),
    )(x3, sc3, sh3)

    out3 = out3[:rows, :cols]
    return out3.reshape(x.shape)


if __name__ == "__main__":
    key = jax.random.PRNGKey(0)
    k_x, k_m, k_s = jax.random.split(key, 3)

    N, C, H, W = 2, 4, 16, 16
    x = jax.random.normal(k_x, (N, C, H, W), dtype=jnp.float32)
    mean = jax.random.normal(k_m, (C, H, W), dtype=jnp.float32)
    std = jnp.abs(jax.random.normal(k_s, (C, H, W), dtype=jnp.float32)) + 0.5

    # Pure-JAX reference (PyTorch semantics). Tolerance 1e-5 because the kernel
    # uses the algebraically equivalent x*scale + shift form (exact reciprocal,
    # not approx), which differs from (x-m)/(s+eps) only by f32 rounding.
    ref = (x - mean[None]) / (std[None] + EPS)

    # Path 1: single-block fast path (default budget).
    y1 = jax.block_until_ready(input_normalizer_encode(x, mean, std))
    assert y1.shape == x.shape and y1.dtype == x.dtype
    assert jnp.allclose(y1, ref, atol=1e-5, rtol=1e-5)

    # Path 2: force the tiled + small-batch-fold path on the same tiny data.
    y2 = jax.block_until_ready(
        input_normalizer_encode(x, mean, std, vmem_block_budget=8 * 1024))
    assert jnp.allclose(y2, ref, atol=1e-5, rtol=1e-5)

    # Path 3: feature dim not a multiple of 128 (lane padding path), N >= 8.
    N3, C3, H3, W3 = 16, 3, 10, 10
    x3 = jax.random.normal(k_x, (N3, C3, H3, W3), dtype=jnp.float32)
    m3 = jax.random.normal(k_m, (C3, H3, W3), dtype=jnp.float32)
    s3 = jnp.abs(jax.random.normal(k_s, (C3, H3, W3), dtype=jnp.float32)) + 0.5
    ref3 = (x3 - m3[None]) / (s3[None] + EPS)
    y3 = jax.block_until_ready(
        input_normalizer_encode(x3, m3, s3, vmem_block_budget=64 * 1024))
    assert jnp.allclose(y3, ref3, atol=1e-5, rtol=1e-5)

    # Path 4: row-blocked 2D grid with row padding; stats held across row axis.
    N4 = 10
    x4 = jax.random.normal(k_x, (N4, C, H, W), dtype=jnp.float32)
    ref4 = (x4 - mean[None]) / (std[None] + EPS)
    y4 = jax.block_until_ready(
        input_normalizer_encode(x4, mean, std,
                                vmem_block_budget=64 * 1024,
                                max_rows_per_block=8))
    assert jnp.allclose(y4, ref4, atol=1e-5, rtol=1e-5)

    print("KERNEL_OK")
</pallas_src>

<mosaic_0001>
module attributes {stable_mosaic.version = 11 : i64} {
  func.func @_affine_kernel(%arg0: i32, %arg1: memref<2x1024xf32, #tpu.memory_space<vmem>>, %arg2: memref<1x1024xf32, #tpu.memory_space<vmem>>, %arg3: memref<1x1024xf32, #tpu.memory_space<vmem>>, %arg4: memref<2x1024xf32, #tpu.memory_space<vmem>>) attributes {dimension_semantics = [#tpu.dimension_semantics<arbitrary>], iteration_bounds = array<i64: 1>, scalar_prefetch = 0 : i64, scratch_operands = 0 : i64, tpu.core_type = #tpu.core_type<tc>, window_params = [{pipeline_mode = #tpu.pipeline_mode<synchronous>, transform_indices = @transform_0, window_bounds = array<i64: 2, 1024>}, {pipeline_mode = #tpu.pipeline_mode<synchronous>, transform_indices = @transform_1, window_bounds = array<i64: 1, 1024>}, {pipeline_mode = #tpu.pipeline_mode<synchronous>, transform_indices = @transform_2, window_bounds = array<i64: 1, 1024>}, {pipeline_mode = #tpu.pipeline_mode<synchronous>, transform_indices = @transform_3, window_bounds = array<i64: 2, 1024>}]} {
    %c0 = arith.constant 0 : index
    %c0_0 = arith.constant 0 : index
    %0 = vector.load %arg1[%c0, %c0_0] : memref<2x1024xf32, #tpu.memory_space<vmem>>, vector<2x1024xf32>
    %c0_1 = arith.constant 0 : index
    %c0_2 = arith.constant 0 : index
    %1 = vector.load %arg2[%c0_1, %c0_2] : memref<1x1024xf32, #tpu.memory_space<vmem>>, vector<1x1024xf32>
    %c0_3 = arith.constant 0 : index
    %c0_4 = arith.constant 0 : index
    %2 = vector.load %arg3[%c0_3, %c0_4] : memref<1x1024xf32, #tpu.memory_space<vmem>>, vector<1x1024xf32>
    %3 = vector.broadcast %1 : vector<1x1024xf32> to vector<2x1024xf32>
    %4 = arith.mulf %0, %3 : vector<2x1024xf32>
    %5 = vector.broadcast %2 : vector<1x1024xf32> to vector<2x1024xf32>
    %6 = arith.addf %4, %5 : vector<2x1024xf32>
    %c0_5 = arith.constant 0 : index
    %c0_6 = arith.constant 0 : index
    %7 = vector.load %arg4[%c0_5, %c0_6] : memref<2x1024xf32, #tpu.memory_space<vmem>>, vector<2x1024xf32>
    tpu.vector_store %arg4[%c0_5, %c0_6], %6 {strides = array<i32>} : memref<2x1024xf32, #tpu.memory_space<vmem>>, vector<2x1024xf32>,
    return
  }
  func.func @transform_0(%arg0: i32) -> (i32, i32) {
    %c0_i32 = arith.constant 0 : i32
    %c0_i32_0 = arith.constant 0 : i32
    %c0_i32_1 = arith.constant 0 : i32
    return %c0_i32, %c0_i32_0 : i32, i32
  }
  func.func @transform_1(%arg0: i32) -> (i32, i32) {
    %c0_i32 = arith.constant 0 : i32
    %c0_i32_0 = arith.constant 0 : i32
    %c0_i32_1 = arith.constant 0 : i32
    return %c0_i32, %c0_i32_0 : i32, i32
  }
  func.func @transform_2(%arg0: i32) -> (i32, i32) {
    %c0_i32 = arith.constant 0 : i32
    %c0_i32_0 = arith.constant 0 : i32
    %c0_i32_1 = arith.constant 0 : i32
    return %c0_i32, %c0_i32_0 : i32, i32
  }
  func.func @transform_3(%arg0: i32) -> (i32, i32) {
    %c0_i32 = arith.constant 0 : i32
    %c0_i32_0 = arith.constant 0 : i32
    %c0_i32_1 = arith.constant 0 : i32
    return %c0_i32, %c0_i32_0 : i32, i32
  }
}

</mosaic_0001>

<llo_original>
// kernel: tpu_custom_call.1
$region0: #{tpu_custom_call.1}
  #allocation0 [shape = 'u32[]', space=smem, size = 0x4, offset = 0x4, fixed_abs, tag = 'smem constant byte address 0x4 - core index']
  #allocation1 [shape = 'u32[144,128]{1,0:T(1,128)}', space=vmem, size = 0x12000, scoped, tag = 'internal scratch']
  %s0 = inlined_call_operand.hbm [shape: f32[2,1024], index: 0, kind: input, shape index: {}]
  %s1 = inlined_call_operand.hbm [shape: f32[1,1024], index: 1, kind: input, shape index: {}]
  %s2 = inlined_call_operand.hbm [shape: f32[1,1024], index: 2, kind: input, shape index: {}]
  %s3 = inlined_call_operand.hbm [shape: f32[2,1024], index: 3, kind: output, shape index: {}]
  %s4 = sld [smem:[#allocation0]]
  $region34: #{tpu_custom_call.1} parent=0
    _
  %s6 = ssub.s32 1, %s4
  %s7 = scalar_select 0, %s6, %s4
  $region1: #{tpu_custom_call.1} parent=0
    #allocation2 [shape = 'u8[8192]{0}', space=vmem, size = 0x2000, scoped, tag = 'input window, operand 0, single buffered']
    #allocation3 [shape = 's32[1]{0}', space=sflag, size = 0x4, scoped, tag = 'scoped memory for tpu_custom_call.1']
    #allocation4 [shape = 's32[1]{0}', space=sflag, size = 0x4, scoped, tag = 'scoped memory for tpu_custom_call.1']
    #allocation5 [shape = 'u8[4096]{0}', space=vmem, size = 0x1000, scoped, tag = 'input window, operand 1, single buffered']
    #allocation6 [shape = 's32[1]{0}', space=sflag, size = 0x4, scoped, tag = 'scoped memory for tpu_custom_call.1']
    #allocation7 [shape = 'u8[4096]{0}', space=vmem, size = 0x1000, scoped, tag = 'input window, operand 2, single buffered']
    #allocation8 [shape = 'u8[8192]{0}', space=vmem, size = 0x2000, scoped, tag = 'output window, operand 0, single buffered']
    %8 = vsyncpa [#allocation3], 0
    %9 = vsyncpa [#allocation6], 0
    %10 = vsyncpa [#allocation4], 0
    // Predicated region
    $region2: #{tpu_custom_call.1} parent=1 // pred_check
      _
    $region3: #{tpu_custom_call.1} parent=1 // pred_check_branch
      %12 = sbr.rel (0) target = $region5
    $region4: #{tpu_custom_call.1} parent=1 // pred_region
      %s14 = ssub.s32 256, 256
      %15 = vsyncadd [#allocation3], %s14
      %s17 = sshll.u32 [#allocation2], 4
      %s18 = int_to_ptr.vmem [resolvable:$true] %s17
      %20 = dma.hbm_to_vmem [thread:$0]  %s0, 256, %s18, [#allocation3]
    $region5: #{tpu_custom_call.1} parent=1 // pred_fallthru
      _
    // Predicated region
    $region6: #{tpu_custom_call.1} parent=1 // pred_check
      _
    $region7: #{tpu_custom_call.1} parent=1 // pred_check_branch
      %22 = sbr.rel (0) target = $region9
    $region8: #{tpu_custom_call.1} parent=1 // pred_region
      %s24 = ssub.s32 128, 128
      %25 = vsyncadd [#allocation6], %s24
      %s27 = sshll.u32 [#allocation5], 4
      %s28 = int_to_ptr.vmem [resolvable:$true] %s27
      %30 = dma.hbm_to_vmem [thread:$0]  %s1, 128, %s28, [#allocation6]
    $region9: #{tpu_custom_call.1} parent=1 // pred_fallthru
      _
    // Predicated region
    $region10: #{tpu_custom_call.1} parent=1 // pred_check
      _
    $region11: #{tpu_custom_call.1} parent=1 // pred_check_branch
      %32 = sbr.rel (0) target = $region13
    $region12: #{tpu_custom_call.1} parent=1 // pred_region
      %s34 = ssub.s32 128, 128
      %35 = vsyncadd [#allocation6], %s34
      %s37 = sshll.u32 [#allocation7], 4
      %s38 = int_to_ptr.vmem [resolvable:$true] %s37
      %40 = dma.hbm_to_vmem [thread:$0]  %s2, 128, %s38, [#allocation6]
    $region13: #{tpu_custom_call.1} parent=1 // pred_fallthru
      _
    // Predicated region
    $region14: #{tpu_custom_call.1} parent=1 // pred_check
      _
    $region15: #{tpu_custom_call.1} parent=1 // pred_check_branch
      %42 = sbr.rel (0) target = $region17
    $region16: #{tpu_custom_call.1} parent=1 // pred_region
      %43 = dma.done [#allocation3], 256
    $region17: #{tpu_custom_call.1} parent=1 // pred_fallthru
      _
    // Predicated region
    $region18: #{tpu_custom_call.1} parent=1 // pred_check
      _
    $region19: #{tpu_custom_call.1} parent=1 // pred_check_branch
      %45 = sbr.rel (0) target = $region21
    $region20: #{tpu_custom_call.1} parent=1 // pred_region
      %46 = dma.done [#allocation6], 128
    $region21: #{tpu_custom_call.1} parent=1 // pred_fallthru
      _
    // Predicated region
    $region22: #{tpu_custom_call.1} parent=1 // pred_check
      _
    $region23: #{tpu_custom_call.1} parent=1 // pred_check_branch
      %48 = sbr.rel (0) target = $region25
    $region24: #{tpu_custom_call.1} parent=1 // pred_region
      %49 = dma.done [#allocation6], 128
    $region25: #{tpu_custom_call.1} parent=1 // pred_fallthru
      _
    %v50 = vld [vmem:[#allocation2] sm:$0xff]
    %v51 = vld [vmem:[#allocation2 + $0x8] sm:$0xff]
    %v52 = vld [vmem:[#allocation5] sm:$0xff]
    %v53 = vld [vmem:[#allocation7] sm:$0xff]
    %v55 = vlaneseq
    %v56 = vshrl.u32 %v55, 7
    %v57 = vsub.s32 0, %v56
    %v58 = vrot.slane %v52, %v57
    %v59 = vlaneseq
    %v60 = vshrl.u32 %v59, 7
    %v61 = vsub.s32 1, %v60
    %v62 = vrot.slane %v52, %v61
    %v63 = vlaneseq
    %v64 = vshrl.u32 %v63, 7
    %v65 = vsub.s32 2, %v64
    %v66 = vrot.slane %v52, %v65
    %v67 = vlaneseq
    %v68 = vshrl.u32 %v67, 7
    %v69 = vsub.s32 3, %v68
    %v70 = vrot.slane %v52, %v69
    %v71 = vlaneseq
    %v72 = vshrl.u32 %v71, 7
    %v73 = vsub.s32 4, %v72
    %v74 = vrot.slane %v52, %v73
    %v75 = vlaneseq
    %v76 = vshrl.u32 %v75, 7
    %v77 = vsub.s32 5, %v76
    %v78 = vrot.slane %v52, %v77
    %v79 = vlaneseq
    %v80 = vshrl.u32 %v79, 7
    %v81 = vsub.s32 6, %v80
    %v82 = vrot.slane %v52, %v81
    %v83 = vlaneseq
    %v84 = vshrl.u32 %v83, 7
    %v85 = vsub.s32 7, %v84
    %v86 = vrot.slane %v52, %v85
    %v87 = vcombine.low %v58, %v62
    %v88 = vcombine.low %v66, %v70
    %v90 = vunpack.c.l.s4 1983009808
    %v91 = vunpack.c.0.s8 %v90
    %v92 = vlaneseq
    %v93 = vshrl.u32 %v92, 7
    %v94 = vsub.s32 %v91, %v93
    %v95 = vrot.slane %v87, %v94
    %v97 = vunpack.c.l.s4 1983009808
    %v98 = vunpack.c.0.s8 %v97
    %v99 = vlaneseq
    %v100 = vshrl.u32 %v99, 7
    %v101 = vsub.s32 %v98, %v100
    %v102 = vrot.slane %v88, %v101
    %v103 = vcombine.low %v95, %v102
    %v104 = vcombine.low %v74, %v78
    %v105 = vcombine.low %v82, %v86
    %v107 = vunpack.c.l.s4 1983009808
    %v108 = vunpack.c.0.s8 %v107
    %v109 = vlaneseq
    %v110 = vshrl.u32 %v109, 7
    %v111 = vsub.s32 %v108, %v110
    %v112 = vrot.slane %v104, %v111
    %v114 = vunpack.c.l.s4 1983009808
    %v115 = vunpack.c.0.s8 %v114
    %v116 = vlaneseq
    %v117 = vshrl.u32 %v116, 7
    %v118 = vsub.s32 %v115, %v117
    %v119 = vrot.slane %v105, %v118
    %v120 = vcombine.low %v112, %v119
    %v123 = vmul.f32 %v50, %v103
    %v124 = vmul.f32 %v51, %v120
    %v126 = vlaneseq
    %v127 = vshrl.u32 %v126, 7
    %v128 = vsub.s32 0, %v127
    %v129 = vrot.slane %v53, %v128
    %v130 = vlaneseq
    %v131 = vshrl.u32 %v130, 7
    %v132 = vsub.s32 1, %v131
    %v133 = vrot.slane %v53, %v132
    %v134 = vlaneseq
    %v135 = vshrl.u32 %v134, 7
    %v136 = vsub.s32 2, %v135
    %v137 = vrot.slane %v53, %v136
    %v138 = vlaneseq
    %v139 = vshrl.u32 %v138, 7
    %v140 = vsub.s32 3, %v139
    %v141 = vrot.slane %v53, %v140
    %v142 = vlaneseq
    %v143 = vshrl.u32 %v142, 7
    %v144 = vsub.s32 4, %v143
    %v145 = vrot.slane %v53, %v144
    %v146 = vlaneseq
    %v147 = vshrl.u32 %v146, 7
    %v148 = vsub.s32 5, %v147
    %v149 = vrot.slane %v53, %v148
    %v150 = vlaneseq
    %v151 = vshrl.u32 %v150, 7
    %v152 = vsub.s32 6, %v151
    %v153 = vrot.slane %v53, %v152
    %v154 = vlaneseq
    %v155 = vshrl.u32 %v154, 7
    %v156 = vsub.s32 7, %v155
    %v157 = vrot.slane %v53, %v156
    %v158 = vcombine.low %v129, %v133
    %v159 = vcombine.low %v137, %v141
    %v161 = vunpack.c.l.s4 1983009808
    %v162 = vunpack.c.0.s8 %v161
    %v163 = vlaneseq
    %v164 = vshrl.u32 %v163, 7
    %v165 = vsub.s32 %v162, %v164
    %v166 = vrot.slane %v158, %v165
    %v168 = vunpack.c.l.s4 1983009808
    %v169 = vunpack.c.0.s8 %v168
    %v170 = vlaneseq
    %v171 = vshrl.u32 %v170, 7
    %v172 = vsub.s32 %v169, %v171
    %v173 = vrot.slane %v159, %v172
    %v174 = vcombine.low %v166, %v173
    %v175 = vcombine.low %v145, %v149
    %v176 = vcombine.low %v153, %v157
    %v178 = vunpack.c.l.s4 1983009808
    %v179 = vunpack.c.0.s8 %v178
    %v180 = vlaneseq
    %v181 = vshrl.u32 %v180, 7
    %v182 = vsub.s32 %v179, %v181
    %v183 = vrot.slane %v175, %v182
    %v185 = vunpack.c.l.s4 1983009808
    %v186 = vunpack.c.0.s8 %v185
    %v187 = vlaneseq
    %v188 = vshrl.u32 %v187, 7
    %v189 = vsub.s32 %v186, %v188
    %v190 = vrot.slane %v176, %v189
    %v191 = vcombine.low %v183, %v190
    %v194 = vadd.f32 %v123, %v174
    %v195 = vadd.f32 %v124, %v191
    %196 = vst [vmem:[#allocation8] sm:$0xff] %v194
    %197 = vst [vmem:[#allocation8 + $0x8] sm:$0xff] %v195
    // Predicated region
    $region26: #{tpu_custom_call.1} parent=1 // pred_check
      _
    $region27: #{tpu_custom_call.1} parent=1 // pred_check_branch
      %199 = sbr.rel (0) target = $region29
    $region28: #{tpu_custom_call.1} parent=1 // pred_region
      %s201 = ssub.s32 256, 256
      %202 = vsyncadd [#allocation4], %s201
      %s204 = sshll.u32 [#allocation8], 4
      %s205 = int_to_ptr.vmem [resolvable:$true] %s204
      %207 = dma.vmem_to_hbm [thread:$0]  %s205, 256, %s3, [#allocation4]
    $region29: #{tpu_custom_call.1} parent=1 // pred_fallthru
      _
    // Predicated region
    $region30: #{tpu_custom_call.1} parent=1 // pred_check
      _
    $region31: #{tpu_custom_call.1} parent=1 // pred_check_branch
      %209 = sbr.rel (0) target = $region33
    $region32: #{tpu_custom_call.1} parent=1 // pred_region
      %210 = dma.done [#allocation4], 256
    $region33: #{tpu_custom_call.1} parent=1 // pred_fallthru
      _
    %211 = vsyncpa [#allocation3], 1
    %212 = vsyncpa [#allocation6], 1
    %213 = vsyncpa [#allocation4], 1

</llo_original>
